<compile_context>
chip_gen: v7x
topology: tpu7x:2x2x1
jax: 0.10.0
libtpu: 0.0.40
codegen_flags: <defaults>
</compile_context>

<pallas_src>
import math
import functools

import jax
import jax.numpy as jnp
from jax.experimental import pallas as pl
from jax.experimental.pallas import tpu as pltpu


def build_pe_table(d_model: int, max_seq_len: int = 500) -> jnp.ndarray:
    """Exact reproduction of the PyTorch __init__ loop (including its
    asymmetric exponent on the cos column and the untouched last column
    for odd d_model)."""
    pe = jnp.zeros((max_seq_len, d_model), dtype=jnp.float32)
    pos = jnp.arange(max_seq_len, dtype=jnp.float32)[:, None]          # (L, 1)
    i_even = jnp.arange(0, d_model - 1, 2)                             # even cols
    den_sin = jnp.power(10000.0, (2.0 * i_even) / d_model)             # 10000**(2i/d)
    den_cos = jnp.power(10000.0, (2.0 * (i_even + 1)) / d_model)       # 10000**(2(i+1)/d)
    pe = pe.at[:, i_even].set(jnp.sin(pos / den_sin[None, :]))
    pe = pe.at[:, i_even + 1].set(jnp.cos(pos / den_cos[None, :]))
    return pe[None, :, :]                                              # (1, L, D)


def _pe_kernel(x_ref, pe_ref, o_ref, *, scale: float):
    # x_ref / o_ref: (tB, tC) lane-dense row tiles of the flattened (B, Cp) input.
    # pe_ref:        (1,  tC) matching PE columns, broadcast over the batch rows.
    o_ref[...] = x_ref[...] * scale + pe_ref[...]


def _round_up(v: int, m: int) -> int:
    return (v + m - 1) // m * m


def positional_encoder(x: jnp.ndarray, pe_full: jnp.ndarray, d_model: int,
                       *,
                       target_block_bytes: int = 4 << 20,
                       min_pallas_bytes: int = 256 << 10,
                       vmem_limit_bytes: int = 32 << 20) -> jnp.ndarray:
    """x: (B, S, D).  pe_full: (1, max_seq_len, D) from build_pe_table."""
    B, S, D = x.shape
    L = pe_full.shape[1]
    assert D == d_model, f"d_model mismatch: {D} vs {d_model}"
    assert S <= L, f"seq_len {S} exceeds max_seq_len {L}"

    scale = math.sqrt(d_model)
    itemsize = x.dtype.itemsize
    C = S * D

    # ---- small-input bailout: launch/pipeline cost dominates, let XLA fuse it.
    if B * C * itemsize < min_pallas_bytes:
        return x * scale + pe_full[:, :S, :].astype(x.dtype)

    # ---- lane-dense layout: flatten (S, D) into one wide trailing dim, padded
    #      to a multiple of 128 lanes so stores are full-lane (unmasked) vst.
    Cp = _round_up(C, 128)
    x2 = x.reshape(B, C)
    if Cp != C:
        x2 = jnp.pad(x2, ((0, 0), (0, Cp - C)))     # one cheap pad copy

    if L * D >= Cp:
        # Row-major flattening of the *full* table: its first S*D columns are
        # exactly pe[:, :S, :] flattened -> BlockSpec selects them for free.
        pe_in = pe_full.reshape(1, L * D).astype(x.dtype)
    else:
        pe_in = jnp.pad(pe_full[:, :S, :].reshape(1, C).astype(x.dtype),
                        ((0, 0), (0, Cp - C)))

    # ---- dtype-aware sublane tile: 8 rows for 4-byte, 16 for 2-byte, 32 for 1-byte.
    sub = max(8, 32 // itemsize)
    tB = B if B <= sub else sub

    # ---- column tile sized to ~target_block_bytes per x block (multiple of 128).
    tC = (target_block_bytes // (tB * itemsize)) // 128 * 128
    tC = int(min(Cp, max(128, tC)))

    # If a whole padded row fits in one column tile, grow tB (in sublane
    # multiples) toward the byte target to cut grid-step count.
    if tC >= Cp and B > tB:
        rows_fit = max(1, target_block_bytes // (Cp * itemsize))
        tB = int(min(B, max(sub, (rows_fit // sub) * sub)))

    n_c = pl.cdiv(Cp, tC)
    n_r = pl.cdiv(B, tB)

    # ---- v7x megacore: make sure at least one parallel axis has extent >= 2
    #      so both TensorCores get work (harmless on v5e/v6e).
    if n_c == 1 and n_r == 1 and Cp >= 256:
        tC = _round_up(pl.cdiv(Cp, 2), 128)
        n_c = pl.cdiv(Cp, tC)

    kernel = functools.partial(_pe_kernel, scale=scale)

    out2 = pl.pallas_call(
        kernel,
        out_shape=jax.ShapeDtypeStruct((B, Cp), x.dtype),
        grid_spec=pltpu.PrefetchScalarGridSpec(
            num_scalar_prefetch=0,
            # Column axis outermost (slowest-changing): the PE block index
            # depends only on it, so PE stays resident in VMEM across the
            # entire inner batch-row sweep (no re-DMA per step).
            grid=(n_c, n_r),
            in_specs=[
                pl.BlockSpec((tB, tC), lambda c, r: (r, c)),    # x tile
                pl.BlockSpec((1, tC), lambda c, r: (0, c)),     # PE (batch-broadcast)
            ],
            out_specs=pl.BlockSpec((tB, tC), lambda c, r: (r, c)),
        ),
        compiler_params=pltpu.CompilerParams(
            dimension_semantics=("parallel", "parallel"),
            vmem_limit_bytes=vmem_limit_bytes),
        cost_estimate=pl.CostEstimate(
            flops=2 * B * C,
            transcendentals=0,
            bytes_accessed=(2 * B * Cp + Cp) * itemsize),
    )(x2, pe_in)

    if Cp != C:
        out2 = out2[:, :C]
    return out2.reshape(B, S, D)


def positional_encoder_ref(x, pe_full, d_model):
    S = x.shape[1]
    return x * math.sqrt(d_model) + pe_full[:, :S, :].astype(x.dtype)


if __name__ == "__main__":
    keys = jax.random.split(jax.random.PRNGKey(0), 4)

    # ---- Case 1: module demo shape, forced through the Pallas path.
    d_model = 32
    B, S = 2, 8
    pe_full = build_pe_table(d_model, 500)
    x = jax.random.normal(keys[0], (B, S, d_model), dtype=jnp.float32)
    out = jax.block_until_ready(
        positional_encoder(x, pe_full, d_model, min_pallas_bytes=0))
    ref = positional_encoder_ref(x, pe_full, d_model)
    assert out.shape == (B, S, d_model)
    assert jnp.allclose(out, ref, atol=1e-5, rtol=1e-5), "case1 mismatch"

    # ---- Case 2: same shape via the default small-input (XLA) path.
    out_small = jax.block_until_ready(positional_encoder(x, pe_full, d_model))
    assert jnp.allclose(out_small, ref, atol=1e-5, rtol=1e-5), "case2 mismatch"

    # ---- Case 3: misaligned C (S*D=240, not a multiple of 128) -> pad path.
    d3 = 24
    pe3 = build_pe_table(d3, 64)
    x3 = jax.random.normal(keys[1], (3, 10, d3), dtype=jnp.float32)
    out3 = jax.block_until_ready(
        positional_encoder(x3, pe3, d3, min_pallas_bytes=0))
    ref3 = positional_encoder_ref(x3, pe3, d3)
    assert jnp.allclose(out3, ref3, atol=1e-5, rtol=1e-5), "case3 mismatch"

    # ---- Case 4: larger batch, exercises row-tile growth + v7x column split.
    d4 = 128
    pe4 = build_pe_table(d4, 128)
    x4 = jax.random.normal(keys[2], (16, 32, d4), dtype=jnp.float32)
    out4 = jax.block_until_ready(positional_encoder(x4, pe4, d4))
    ref4 = positional_encoder_ref(x4, pe4, d4)
    assert jnp.allclose(out4, ref4, atol=1e-5, rtol=1e-5), "case4 mismatch"

    # ---- Case 5: bf16 input, exercises the dtype-aware (16-row) sublane tile.
    d5 = 128
    pe5 = build_pe_table(d5, 64)
    x5 = jax.random.normal(keys[3], (32, 16, d5), dtype=jnp.bfloat16)
    out5 = jax.block_until_ready(
        positional_encoder(x5, pe5, d5, min_pallas_bytes=0))
    ref5 = positional_encoder_ref(x5, pe5, d5)
    assert jnp.allclose(out5.astype(jnp.float32), ref5.astype(jnp.float32),
                        atol=1e-1, rtol=1e-2), "case5 mismatch"

    print("KERNEL_OK")
</pallas_src>

<mosaic_0001>
module attributes {stable_mosaic.version = 11 : i64} {
  func.func @_pe_kernel(%arg0: i32, %arg1: i32, %arg2: memref<2x128xf32, #tpu.memory_space<vmem>>, %arg3: memref<1x128xf32, #tpu.memory_space<vmem>>, %arg4: memref<2x128xf32, #tpu.memory_space<vmem>>) attributes {dimension_semantics = [#tpu.dimension_semantics<parallel>, #tpu.dimension_semantics<parallel>], iteration_bounds = array<i64: 2, 1>, scalar_prefetch = 0 : i64, scratch_operands = 0 : i64, tpu.core_type = #tpu.core_type<tc>, window_params = [{transform_indices = @transform_0, window_bounds = array<i64: 2, 128>}, {transform_indices = @transform_1, window_bounds = array<i64: 1, 128>}, {transform_indices = @transform_2, window_bounds = array<i64: 2, 128>}]} {
    %c0 = arith.constant 0 : index
    %c0_0 = arith.constant 0 : index
    %0 = vector.load %arg2[%c0, %c0_0] : memref<2x128xf32, #tpu.memory_space<vmem>>, vector<2x128xf32>
    %cst = arith.constant 5.65685415 : f32
    %1 = vector.broadcast %cst : f32 to vector<2x128xf32>
    %2 = arith.mulf %0, %1 : vector<2x128xf32>
    %c0_1 = arith.constant 0 : index
    %c0_2 = arith.constant 0 : index
    %3 = vector.load %arg3[%c0_1, %c0_2] : memref<1x128xf32, #tpu.memory_space<vmem>>, vector<1x128xf32>
    %4 = vector.broadcast %3 : vector<1x128xf32> to vector<2x128xf32>
    %5 = arith.addf %2, %4 : vector<2x128xf32>
    %c0_3 = arith.constant 0 : index
    %c0_4 = arith.constant 0 : index
    %6 = vector.load %arg4[%c0_3, %c0_4] : memref<2x128xf32, #tpu.memory_space<vmem>>, vector<2x128xf32>
    tpu.vector_store %arg4[%c0_3, %c0_4], %5 {strides = array<i32>} : memref<2x128xf32, #tpu.memory_space<vmem>>, vector<2x128xf32>,
    return
  }
  func.func @transform_0(%arg0: i32, %arg1: i32) -> (i32, i32) {
    %c0_i32 = arith.constant 0 : i32
    return %arg1, %arg0 : i32, i32
  }
  func.func @transform_1(%arg0: i32, %arg1: i32) -> (i32, i32) {
    %c0_i32 = arith.constant 0 : i32
    %c0_i32_0 = arith.constant 0 : i32
    return %c0_i32, %arg0 : i32, i32
  }
  func.func @transform_2(%arg0: i32, %arg1: i32) -> (i32, i32) {
    %c0_i32 = arith.constant 0 : i32
    return %arg1, %arg0 : i32, i32
  }
}

</mosaic_0001>

<llo_original>
// kernel: tpu_custom_call.1
$region0: #{tpu_custom_call.1}
  #allocation0 [shape = 'u32[]', space=smem, size = 0x4, offset = 0x4, fixed_abs, tag = 'smem constant byte address 0x4 - core index']
  #allocation1 [shape = 'u32[144,128]{1,0:T(1,128)}', space=vmem, size = 0x12000, scoped, tag = 'internal scratch']
  %s0 = inlined_call_operand.hbm [shape: f32[2,256], index: 0, kind: input, shape index: {}]
  %s1 = inlined_call_operand.hbm [shape: f32[1,16000], index: 1, kind: input, shape index: {}]
  %s2 = inlined_call_operand.hbm [shape: f32[2,256], index: 2, kind: output, shape index: {}]
  %s3 = sld [smem:[#allocation0]]
  $region49: #{tpu_custom_call.1} parent=0
    _
  %s5 = ssub.s32 1, %s3
  %s6 = scalar_select 0, %s5, %s3
  $region1: #{tpu_custom_call.1} parent=0
    #allocation2 [shape = 'u8[2048]{0}', space=vmem, size = 0x800, scoped, tag = 'input window, operand 0']
    #allocation3 [shape = 's32[2]{0}', space=sflag, size = 0x8, scoped, tag = 'scoped memory for tpu_custom_call.1']
    #allocation4 [shape = 's32[2]{0}', space=sflag, size = 0x8, scoped, tag = 'scoped memory for tpu_custom_call.1']
    #allocation5 [shape = 'u8[1024]{0}', space=vmem, size = 0x400, scoped, tag = 'input window, operand 1']
    #allocation6 [shape = 's32[2]{0}', space=sflag, size = 0x8, scoped, tag = 'scoped memory for tpu_custom_call.1']
    #allocation7 [shape = 'u8[2048]{0}', space=vmem, size = 0x800, scoped, tag = 'output window, operand 0']
    %7 = vsyncpa [#allocation3], 0
    %s8 = scalar_lea.sflag [#allocation3], 1
    %9 = vsyncpa %s8, 0
    %10 = vsyncpa [#allocation6], 0
    %s11 = scalar_lea.sflag [#allocation6], 1
    %12 = vsyncpa %s11, 0
    %13 = vsyncpa [#allocation4], 0
    %s14 = scalar_lea.sflag [#allocation4], 1
    %15 = vsyncpa %s14, 0
    loop: start=0, step=1, limit=4
    $region2: #{tpu_custom_call.1} parent=1 // loop_pre_header
      _
    $region3: #{tpu_custom_call.1} parent=1 // loop_header
      %s17 = sphi 0, %s21
      %p18 = scmp.ge.s32.totalorder %s17, 4
      %s24 = sphi 0, %s36
      %s25 = sphi 0, %s32
      %s26 = sphi 0, %s24
      %s27 = sphi 0, %s25
      %s28 = sphi 0, %s26
      %s29 = sphi 0, %s27
      %s41 = sphi 0, %s43
      %s44 = sphi 0, %s41
      %s45 = sphi 0, %s44
      %s61 = sphi 0, %s45
      %s67 = sphi 0, %s69
      %s70 = sphi 0, %s67
      %s71 = sphi 0, %s70
      %s87 = sphi 0, %s71
      %s95 = sphi 0, %s97
      %s98 = sphi 0, %s95
      %s99 = sphi 0, %s98
      %s115 = sphi 0, %s99
    $region4: #{tpu_custom_call.1} parent=1 // loop_header_branch
      %20 = sbr.rel (%p18) target = $region8
    $region5: #{tpu_custom_call.1} parent=1 // loop_body
      %s22 = ssub.s32 %s17, 1
      %s23 = ssub.s32 %s17, 2
      %s30 = sadd.s32 1, %s25
      %p31 = scmp.ge.s32.totalorder %s30, 1
      %s32 = scalar_select %p31, 0, %s30
      %s33 = sadd.s32 1, %s24
      %s34 = scalar_select %p31, %s33, %s24
      %p35 = scmp.ge.s32.totalorder %s34, 2
      %s36 = scalar_select %p35, 0, %s34
      %s37 = ssub.s32 %s25, %s32
      %s38 = ssub.s32 %s24, %s36
      %s39 = sor.u32 %s37, %s38
      %p40 = scmp.eq.s32.totalorder %s39, 0
      %s42 = sadd.s32 %s41, 1
      %s43 = scalar_select %p40, %s41, %s42
      %p46 = pneg %p40
      %p47 = scmp.eq.s32.totalorder %s17, 1
      %p48 = por %p46, %p47
      %p49 = scmp.ne.s32.totalorder %s41, %s44
      %p50 = scmp.eq.s32.totalorder %s17, 0
      %p51 = por %p49, %p50
      %p52 = scmp.ne.s32.totalorder %s41, %s44
      %p53 = scmp.eq.s32.totalorder %s22, 1
      %p54 = por %p52, %p53
      %p55 = scmp.ne.s32.totalorder %s44, %s45
      %p56 = scmp.eq.s32.totalorder %s22, 0
      %p57 = por %p55, %p56
      %p58 = scmp.ne.s32.totalorder %s44, %s45
      %p59 = scmp.eq.s32.totalorder %s23, 1
      %p60 = por %p58, %p59
      %p62 = scmp.ne.s32.totalorder %s45, %s61
      %p63 = scmp.eq.s32.totalorder %s23, 0
      %p64 = por %p62, %p63
      %s65 = ssub.s32 %s24, %s36
      %p66 = scmp.eq.s32.totalorder %s65, 0
      %s68 = sadd.s32 %s67, 1
      %s69 = scalar_select %p66, %s67, %s68
      %p72 = pneg %p66
      %p73 = scmp.eq.s32.totalorder %s17, 1
      %p74 = por %p72, %p73
      %p75 = scmp.ne.s32.totalorder %s67, %s70
      %p76 = scmp.eq.s32.totalorder %s17, 0
      %p77 = por %p75, %p76
      %p78 = scmp.ne.s32.totalorder %s67, %s70
      %p79 = scmp.eq.s32.totalorder %s22, 1
      %p80 = por %p78, %p79
      %p81 = scmp.ne.s32.totalorder %s70, %s71
      %p82 = scmp.eq.s32.totalorder %s22, 0
      %p83 = por %p81, %p82
      %p84 = scmp.ne.s32.totalorder %s70, %s71
      %p85 = scmp.eq.s32.totalorder %s23, 1
      %p86 = por %p84, %p85
      %p88 = scmp.ne.s32.totalorder %s71, %s87
      %p89 = scmp.eq.s32.totalorder %s23, 0
      %p90 = por %p88, %p89
      %s91 = ssub.s32 %s25, %s32
      %s92 = ssub.s32 %s24, %s36
      %s93 = sor.u32 %s91, %s92
      %p94 = scmp.eq.s32.totalorder %s93, 0
      %s96 = sadd.s32 %s95, 1
      %s97 = scalar_select %p94, %s95, %s96
      %p100 = pneg %p94
      %p101 = scmp.eq.s32.totalorder %s17, 1
      %p102 = por %p100, %p101
      %p103 = scmp.ne.s32.totalorder %s95, %s98
      %p104 = scmp.eq.s32.totalorder %s17, 0
      %p105 = por %p103, %p104
      %p106 = scmp.ne.s32.totalorder %s95, %s98
      %p107 = scmp.eq.s32.totalorder %s22, 1
      %p108 = por %p106, %p107
      %p109 = scmp.ne.s32.totalorder %s98, %s99
      %p110 = scmp.eq.s32.totalorder %s22, 0
      %p111 = por %p109, %p110
      %p112 = scmp.ne.s32.totalorder %s98, %s99
      %p113 = scmp.eq.s32.totalorder %s23, 1
      %p114 = por %p112, %p113
      %p116 = scmp.ne.s32.totalorder %s99, %s115
      %p117 = scmp.eq.s32.totalorder %s23, 0
      %p118 = por %p116, %p117
      %p119 = scmp.le.s32.totalorder 1, %s17
      %p120 = scmp.lt.s32.totalorder %s17, 3
      %p121 = pnand %p119, %p120
      %p122 = pneg %p121
      // Predicated region
      $region9: #{tpu_custom_call.1} parent=5 // pred_check
        _
      $region10: #{tpu_custom_call.1} parent=5 // pred_check_branch
        %124 = sbr.rel (%p121) target = $region12
      $region11: #{tpu_custom_call.1} parent=5 // pred_region
        %s125 = ssub.s32 %s17, 1
      $region12: #{tpu_custom_call.1} parent=5 // pred_fallthru
        _
      %p126 = scmp.lt.s32.totalorder %s17, 2
      // Predicated region
      $region13: #{tpu_custom_call.1} parent=5 // pred_check
        %p127 = pneg %p126
      $region14: #{tpu_custom_call.1} parent=5 // pred_check_branch
        %129 = sbr.rel (%p127) target = $region16
      $region15: #{tpu_custom_call.1} parent=5 // pred_region
        // Predicated region
        $region17: #{tpu_custom_call.1} parent=15 // pred_check
          %p130 = pneg %p51
        $region18: #{tpu_custom_call.1} parent=15 // pred_check_branch
          %132 = sbr.rel (%p130) target = $region20
        $region19: #{tpu_custom_call.1} parent=15 // pred_region
          %s133 = sand.u32 %s41, 1
          %s134 = scalar_lea.sflag [#allocation3], %s133
          %s135 = sand.u32 %s41, 1
          %s136 = smul.addr %s135, 2
          %s137 = scalar_lea.vmem [#allocation2], %s136
          %s139 = ssub.s32 32, 32
          %140 = vsyncadd %s134, %s139
          %s141 = smul.addr %s25, 2
          %s142 = sadd.s32 %s24, %s141
          %s143 = smul.addr %s142, 32
          %s144 = scalar_lea.hbm %s0, %s143
          %s146 = sshll.u32 %s137, 4
          %s147 = int_to_ptr.vmem [resolvable:$true] %s146
          %149 = dma.hbm_to_vmem [thread:$0]  %s144, 32, %s147, %s134
        $region20: #{tpu_custom_call.1} parent=15 // pred_fallthru
          _
        // Predicated region
        $region21: #{tpu_custom_call.1} parent=15 // pred_check
          %p150 = pneg %p77
        $region22: #{tpu_custom_call.1} parent=15 // pred_check_branch
          %152 = sbr.rel (%p150) target = $region24
        $region23: #{tpu_custom_call.1} parent=15 // pred_region
          %s153 = sand.u32 %s67, 1
          %s154 = scalar_lea.sflag [#allocation6], %s153
          %s155 = sand.u32 %s67, 1
          %s156 = scalar_lea.vmem [#allocation5], %s155
          %s158 = ssub.s32 16, 16
          %159 = vsyncadd %s154, %s158
          %s160 = smul.addr %s24, 16
          %s161 = scalar_lea.hbm %s1, %s160
          %s163 = sshll.u32 %s156, 4
          %s164 = int_to_ptr.vmem [resolvable:$true] %s163
          %166 = dma.hbm_to_vmem [thread:$0]  %s161, 16, %s164, %s154
        $region24: #{tpu_custom_call.1} parent=15 // pred_fallthru
          _
      $region16: #{tpu_custom_call.1} parent=5 // pred_fallthru
        _
      %p167 = scmp.le.s32.totalorder 1, %s17
      %p168 = scmp.lt.s32.totalorder %s17, 3
      %p169 = pnand %p167, %p168
      %p170 = pneg %p169
      // Predicated region
      $region25: #{tpu_custom_call.1} parent=5 // pred_check
        _
      $region26: #{tpu_custom_call.1} parent=5 // pred_check_branch
        %172 = sbr.rel (%p169) target = $region28
      $region27: #{tpu_custom_call.1} parent=5 // pred_region
        %s173 = ssub.s32 %s17, 1
        %s174 = sand.u32 %s44, 1
        %s175 = scalar_lea.sflag [#allocation3], %s174
        %s176 = sand.u32 %s44, 1
        %s177 = smul.addr %s176, 2
        %s178 = scalar_lea.vmem [#allocation2], %s177
        // Predicated region
        $region29: #{tpu_custom_call.1} parent=27 // pred_check
          %p179 = pneg %p57
        $region30: #{tpu_custom_call.1} parent=27 // pred_check_branch
          %181 = sbr.rel (%p179) target = $region32
        $region31: #{tpu_custom_call.1} parent=27 // pred_region
          %182 = dma.done %s175, 32
        $region32: #{tpu_custom_call.1} parent=27 // pred_fallthru
          _
        %s183 = sand.u32 %s70, 1
        %s184 = scalar_lea.sflag [#allocation6], %s183
        %s185 = sand.u32 %s70, 1
        %s186 = scalar_lea.vmem [#allocation5], %s185
        // Predicated region
        $region33: #{tpu_custom_call.1} parent=27 // pred_check
          %p187 = pneg %p83
        $region34: #{tpu_custom_call.1} parent=27 // pred_check_branch
          %189 = sbr.rel (%p187) target = $region36
        $region35: #{tpu_custom_call.1} parent=27 // pred_region
          %190 = dma.done %s184, 16
        $region36: #{tpu_custom_call.1} parent=27 // pred_fallthru
          _
        %s191 = sand.u32 %s44, 1
        %s192 = scalar_lea.sflag [#allocation3], %s191
        %s193 = sand.u32 %s44, 1
        %s194 = smul.addr %s193, 2
        %s195 = scalar_lea.vmem [#allocation2], %s194
        %p196 = pneg %p57
        %p197 = pneg %p54
        %s198 = sand.u32 %s70, 1
        %s199 = scalar_lea.sflag [#allocation6], %s198
        %s200 = sand.u32 %s70, 1
        %s201 = scalar_lea.vmem [#allocation5], %s200
        %p202 = pneg %p83
        %p203 = pneg %p80
        %p204 = pneg %p111
        %p205 = pneg %p108
        %s206 = sand.u32 %s98, 1
        %s207 = scalar_lea.sflag [#allocation4], %s206
        %s208 = sand.u32 %s98, 1
        %s209 = smul.addr %s208, 2
        %s210 = scalar_lea.vmem [#allocation7], %s209
        %v211 = vld [vmem:[%s178] sm:$0x3]
        %v212 = vmul.f32 %v211, 5.656854
        %v213 = vld [vmem:[%s186] sm:$0x1]
        %v215 = vlaneseq
        %v216 = vshrl.u32 %v215, 7
        %v217 = vsub.s32 0, %v216
        %v218 = vrot.slane %v213, %v217
        %v220 = vadd.f32 %v212, %v218
        %221 = vst [vmem:[%s210] sm:$0x3] %v220
        %s222 = sand.u32 %s98, 1
        %s223 = scalar_lea.sflag [#allocation4], %s222
        %s224 = sand.u32 %s98, 1
        %s225 = smul.addr %s224, 2
        %s226 = scalar_lea.vmem [#allocation7], %s225
        // Predicated region
        $region37: #{tpu_custom_call.1} parent=27 // pred_check
          %p227 = pneg %p108
        $region38: #{tpu_custom_call.1} parent=27 // pred_check_branch
          %229 = sbr.rel (%p227) target = $region40
        $region39: #{tpu_custom_call.1} parent=27 // pred_region
          %s231 = ssub.s32 32, 32
          %232 = vsyncadd %s223, %s231
          %s233 = smul.addr %s27, 2
          %s234 = sadd.s32 %s26, %s233
          %s235 = smul.addr %s234, 32
          %s236 = scalar_lea.hbm %s2, %s235
          %s238 = sshll.u32 %s226, 4
          %s239 = int_to_ptr.vmem [resolvable:$true] %s238
          %241 = dma.vmem_to_hbm [thread:$0]  %s239, 32, %s236, %s223
        $region40: #{tpu_custom_call.1} parent=27 // pred_fallthru
          _
      $region28: #{tpu_custom_call.1} parent=5 // pred_fallthru
        _
      %p242 = scmp.le.s32.totalorder 2, %s17
      // Predicated region
      $region41: #{tpu_custom_call.1} parent=5 // pred_check
        %p243 = pneg %p242
      $region42: #{tpu_custom_call.1} parent=5 // pred_check_branch
        %245 = sbr.rel (%p243) target = $region44
      $region43: #{tpu_custom_call.1} parent=5 // pred_region
        %s246 = ssub.s32 %s17, 2
        // Predicated region
        $region45: #{tpu_custom_call.1} parent=43 // pred_check
          %p247 = pneg %p114
        $region46: #{tpu_custom_call.1} parent=43 // pred_check_branch
          %249 = sbr.rel (%p247) target = $region48
        $region47: #{tpu_custom_call.1} parent=43 // pred_region
          %s250 = sand.u32 %s99, 1
          %s251 = scalar_lea.sflag [#allocation4], %s250
          %s252 = sand.u32 %s99, 1
          %s253 = smul.addr %s252, 2
          %s254 = scalar_lea.vmem [#allocation7], %s253
          %255 = dma.done %s251, 32
        $region48: #{tpu_custom_call.1} parent=43 // pred_fallthru
          _
      $region44: #{tpu_custom_call.1} parent=5 // pred_fallthru
        _
    $region6: #{tpu_custom_call.1} parent=1 // loop_footer
      %s21 = sadd.s32 1, %s17
    $region7: #{tpu_custom_call.1} parent=1 // loop_footer_branch
      %16 = sbr.rel target = $region3
    $region8: #{tpu_custom_call.1} parent=1 // loop_exit
      _
    %256 = vsyncpa [#allocation3], 1
    %s257 = scalar_lea.sflag [#allocation3], 1
    %258 = vsyncpa %s257, 1
    %259 = vsyncpa [#allocation6], 1
    %s260 = scalar_lea.sflag [#allocation6], 1
    %261 = vsyncpa %s260, 1
    %262 = vsyncpa [#allocation4], 1
    %s263 = scalar_lea.sflag [#allocation4], 1
    %264 = vsyncpa %s263, 1

</llo_original>
